<compile_context>
chip_gen: v6e
topology: v6e:2x2x1
jax: 0.10.0
libtpu: 0.0.40
codegen_flags: <defaults>
</compile_context>

<pallas_src>
import jax
import jax.numpy as jnp
from jax.experimental import pallas as pl
from jax.experimental.pallas import tpu as pltpu

# problem sizes (small, consistent with the module's forward)
B, L, D, H, P, V = 2, 8, 32, 5, 3, 30   # batch, seq, bert_dim, attn hops, polarities, vocab
VP = 32                                 # vocab padded to the contraction width
SLAB_ROWS = 232                         # packed parameter slab rows (all 8-aligned sections)

_VMEM = pl.BlockSpec(memory_space=pltpu.MemorySpace.VMEM)


# ---------------------------------------------------------------------------
# Fused kernel: embedding -> encoder/pooler -> masked 5-hop attention -> dense
# ---------------------------------------------------------------------------
def _bert_att_kernel(ids_ref, mask_ref, wslab_ref, logits_ref):
    # --- static, 8-row-aligned views into the packed parameter slab ----------
    embed  = wslab_ref[0:32, :]      # (VP, D)  rows >= V are zero
    w_enc  = wslab_ref[32:64, :]     # (D, D)
    w_pool = wslab_ref[64:96, :]     # (D, D)
    w_att  = wslab_ref[96:128, :]    # (D, D)   cols >= H are zero
    w1p    = wslab_ref[128:160, :]   # (D, D)   rows of w1 multiplying pooled
    w1a    = wslab_ref[160:192, :]   # (D, D)   rows of w1 multiplying att_hidden
    w2     = wslab_ref[192:224, :]   # (D, D)   cols >= P are zero
    biases = wslab_ref[224:232, :]   # (8, D):  b_enc, b_pool, b1, b2(pad), 0...
    b_enc, b_pool = biases[0:1, :], biases[1:2, :]
    b1, b2 = biases[2:3, :], biases[3:4, :]

    ids = ids_ref[...]               # (B, L) int32
    mask = mask_ref[...]             # (B, L) f32

    # --- embedding lookup: one-hot -> single 2D MXU matmul --------------------
    iota_v = jax.lax.broadcasted_iota(jnp.int32, (B, L, VP), 2)
    one_hot = (ids[:, :, None] == iota_v).astype(jnp.float32).reshape(B * L, VP)
    emb2d = jnp.dot(one_hot, embed, preferred_element_type=jnp.float32)    # (B*L, D)

    # --- synthetic BERT encoder + pooler (2D matmuls only) --------------------
    sent2d = jnp.tanh(
        jnp.dot(emb2d, w_enc, preferred_element_type=jnp.float32) + b_enc)  # (B*L, D)
    sent3d = sent2d.reshape(B, L, D)
    cls = sent3d[:, 0, :]                                                    # (B, D)
    pooled = jnp.tanh(
        jnp.dot(cls, w_pool, preferred_element_type=jnp.float32) + b_pool)   # (B, D)

    # --- masked 5-hop attention pooling ---------------------------------------
    scores = jnp.dot(sent2d, w_att, preferred_element_type=jnp.float32)      # (B*L, D)
    scores = scores[:, :H].reshape(B, L, H)                                  # (B, L, H)
    addm = (mask - 1.0) * jnp.float32(1e9)            # additive mask: 0 valid / -1e9 pad
    scores = scores + addm[:, :, None]
    scores = scores - jnp.max(scores, axis=1, keepdims=True)                 # softmax over L
    e = jnp.exp(scores)
    inv = pl.reciprocal(jnp.sum(e, axis=1, keepdims=True), approx=True)      # (B, 1, H) EUP
    # Hop-mean is linear -> fold 1/H into the per-hop weights, average the
    # weights over hops first, then do ONE VPU broadcast-mult + sum over L
    # instead of a batched (K=8, M=5) MXU matmul.
    w_mean = jnp.sum(e * (inv * jnp.float32(1.0 / H)), axis=2)               # (B, L)
    att_hidden = jnp.sum(w_mean[:, :, None] * sent3d, axis=1)                # (B, D)

    # --- dense head: split matmul replaces concat([pooled, att_hidden]) -------
    hidden = jnp.maximum(
        jnp.dot(pooled, w1p, preferred_element_type=jnp.float32)
        + jnp.dot(att_hidden, w1a, preferred_element_type=jnp.float32)
        + b1, 0.0)                                                           # (B, D)
    logits_full = jnp.dot(hidden, w2, preferred_element_type=jnp.float32) + b2
    logits_ref[...] = logits_full[:, :P]                                     # (B, P)


# ---------------------------------------------------------------------------
# Parameter init (deterministic, in-script) + host-side packing into one slab
# ---------------------------------------------------------------------------
def init_params(key):
    ks = jax.random.split(key, 6)
    s = 0.05
    return {
        'embed':  jax.random.normal(ks[0], (V, D), jnp.float32) * s,
        'w_enc':  jax.random.normal(ks[1], (D, D), jnp.float32) * s,
        'b_enc':  jnp.zeros((1, D), jnp.float32),
        'w_pool': jax.random.normal(ks[2], (D, D), jnp.float32) * s,
        'b_pool': jnp.zeros((1, D), jnp.float32),
        'w_att':  jax.random.normal(ks[3], (D, H), jnp.float32) * s,
        'w1':     jax.random.normal(ks[4], (2 * D, D), jnp.float32) * s,
        'b1':     jnp.zeros((1, D), jnp.float32),
        'w2':     jax.random.normal(ks[5], (D, P), jnp.float32) * s,
        'b2':     jnp.zeros((1, P), jnp.float32),
    }


def pack_params(p):
    """Pack every weight/bias into one (SLAB_ROWS, D) f32 slab (one DMA)."""
    def pad2(x, rows, cols):
        return jnp.pad(x, ((0, rows - x.shape[0]), (0, cols - x.shape[1])))
    bias = jnp.zeros((8, D), jnp.float32)
    bias = bias.at[0, :].set(p['b_enc'][0])
    bias = bias.at[1, :].set(p['b_pool'][0])
    bias = bias.at[2, :].set(p['b1'][0])
    bias = bias.at[3, :P].set(p['b2'][0])
    slab = jnp.concatenate([
        pad2(p['embed'], VP, D),     # rows   0: 32
        p['w_enc'],                  # rows  32: 64
        p['w_pool'],                 # rows  64: 96
        pad2(p['w_att'], D, D),      # rows  96:128
        p['w1'],                     # rows 128:192
        pad2(p['w2'], D, D),         # rows 192:224
        bias,                        # rows 224:232
    ], axis=0).astype(jnp.float32)
    assert slab.shape == (SLAB_ROWS, D)
    return slab


# ---------------------------------------------------------------------------
# Forward wrapper: one gridless, all-VMEM pallas_call (3 inputs, 1 output)
# ---------------------------------------------------------------------------
def _bert_att_forward(token_ids, attention_mask, wslab):
    # text_len = sum(token != 0) only feeds SqueezeEmbedding, whose pad
    # truncation is a logits-level no-op given the attention mask.
    return pl.pallas_call(
        _bert_att_kernel,
        in_specs=[_VMEM, _VMEM, _VMEM],
        out_specs=_VMEM,
        out_shape=jax.ShapeDtypeStruct((B, P), jnp.float32),
    )(token_ids, attention_mask, wslab)


bert_att_forward = jax.jit(_bert_att_forward)


if __name__ == "__main__":
    key = jax.random.PRNGKey(0)
    k_tok, k_par = jax.random.split(key)

    # deterministic token ids: first `length` positions nonzero, rest padding (0)
    lengths = jnp.array([L, 5], dtype=jnp.int32)
    pos = jnp.arange(L)[None, :]
    rand_ids = jax.random.randint(k_tok, (B, L), 1, V)
    token_ids = jnp.where(pos < lengths[:, None], rand_ids, 0).astype(jnp.int32)
    attention_mask = (token_ids != 0).astype(jnp.float32)

    params = init_params(k_par)
    wslab = pack_params(params)          # packed once, outside the jitted forward

    logits = bert_att_forward(token_ids, attention_mask, wslab)
    logits = jax.block_until_ready(logits)
    assert logits.shape == (B, P) and logits.dtype == jnp.float32
    assert bool(jnp.all(jnp.isfinite(logits)))
    print("KERNEL_OK")
</pallas_src>

<mosaic_0001>
module attributes {stable_mosaic.version = 11 : i64} {
  func.func @_bert_att_kernel(%arg0: memref<2x8xi32, #tpu.memory_space<vmem>>, %arg1: memref<2x8xf32, #tpu.memory_space<vmem>>, %arg2: memref<232x32xf32, #tpu.memory_space<vmem>>, %arg3: memref<2x3xf32, #tpu.memory_space<vmem>>) attributes {dimension_semantics = [], scalar_prefetch = 0 : i64, scratch_operands = 0 : i64, tpu.core_type = #tpu.core_type<tc>} {
    %c0 = arith.constant 0 : index
    %c0_0 = arith.constant 0 : index
    %0 = vector.load %arg2[%c0, %c0_0] : memref<232x32xf32, #tpu.memory_space<vmem>>, vector<32x32xf32>
    %c32 = arith.constant 32 : index
    %c0_1 = arith.constant 0 : index
    %1 = vector.load %arg2[%c32, %c0_1] : memref<232x32xf32, #tpu.memory_space<vmem>>, vector<32x32xf32>
    %c64 = arith.constant 64 : index
    %c0_2 = arith.constant 0 : index
    %2 = vector.load %arg2[%c64, %c0_2] : memref<232x32xf32, #tpu.memory_space<vmem>>, vector<32x32xf32>
    %c96 = arith.constant 96 : index
    %c0_3 = arith.constant 0 : index
    %3 = vector.load %arg2[%c96, %c0_3] : memref<232x32xf32, #tpu.memory_space<vmem>>, vector<32x32xf32>
    %c128 = arith.constant 128 : index
    %c0_4 = arith.constant 0 : index
    %4 = vector.load %arg2[%c128, %c0_4] : memref<232x32xf32, #tpu.memory_space<vmem>>, vector<32x32xf32>
    %c160 = arith.constant 160 : index
    %c0_5 = arith.constant 0 : index
    %5 = vector.load %arg2[%c160, %c0_5] : memref<232x32xf32, #tpu.memory_space<vmem>>, vector<32x32xf32>
    %c192 = arith.constant 192 : index
    %c0_6 = arith.constant 0 : index
    %6 = vector.load %arg2[%c192, %c0_6] : memref<232x32xf32, #tpu.memory_space<vmem>>, vector<32x32xf32>
    %c224 = arith.constant 224 : index
    %c0_7 = arith.constant 0 : index
    %7 = vector.load %arg2[%c224, %c0_7] : memref<232x32xf32, #tpu.memory_space<vmem>>, vector<8x32xf32>
    %8 = vector.extract_strided_slice %7 {offsets = [0, 0], sizes = [1, 32], strides = [1, 1]} : vector<8x32xf32> to vector<1x32xf32>
    %9 = vector.extract_strided_slice %7 {offsets = [1, 0], sizes = [1, 32], strides = [1, 1]} : vector<8x32xf32> to vector<1x32xf32>
    %10 = vector.extract_strided_slice %7 {offsets = [2, 0], sizes = [1, 32], strides = [1, 1]} : vector<8x32xf32> to vector<1x32xf32>
    %11 = vector.extract_strided_slice %7 {offsets = [3, 0], sizes = [1, 32], strides = [1, 1]} : vector<8x32xf32> to vector<1x32xf32>
    %c0_8 = arith.constant 0 : index
    %c0_9 = arith.constant 0 : index
    %12 = vector.load %arg0[%c0_8, %c0_9] : memref<2x8xi32, #tpu.memory_space<vmem>>, vector<2x8xi32>
    %c0_10 = arith.constant 0 : index
    %c0_11 = arith.constant 0 : index
    %13 = vector.load %arg1[%c0_10, %c0_11] : memref<2x8xf32, #tpu.memory_space<vmem>>, vector<2x8xf32>
    %14 = tpu.iota {dimensions = array<i32: 2>} : vector<2x8x32xi32>
    %15 = vector.shape_cast %12 : vector<2x8xi32> to vector<2x8x1xi32>
    %16 = vector.broadcast %15 : vector<2x8x1xi32> to vector<2x8x32xi32>
    %17 = arith.cmpi eq, %16, %14 : vector<2x8x32xi32>
    %18 = arith.extui %17 : vector<2x8x32xi1> to vector<2x8x32xi32>
    %19 = arith.sitofp %18 : vector<2x8x32xi32> to vector<2x8x32xf32>
    %20 = vector.shape_cast %19 : vector<2x8x32xf32> to vector<16x32xf32>
    %cst = arith.constant dense<0.000000e+00> : vector<16x32xf32>
    %21 = tpu.matmul %20, %0, %cst {dimension_numbers = #tpu.dot_dimension_numbers<[1], [0], [0], [1], [0, 0, 1, 1], [], []>} : vector<16x32xf32>, vector<32x32xf32>, vector<16x32xf32> -> vector<16x32xf32>
    %cst_12 = arith.constant dense<0.000000e+00> : vector<16x32xf32>
    %22 = tpu.matmul %21, %1, %cst_12 {dimension_numbers = #tpu.dot_dimension_numbers<[1], [0], [0], [1], [0, 0, 1, 1], [], []>} : vector<16x32xf32>, vector<32x32xf32>, vector<16x32xf32> -> vector<16x32xf32>
    %23 = vector.broadcast %8 : vector<1x32xf32> to vector<16x32xf32>
    %24 = arith.addf %22, %23 : vector<16x32xf32>
    %25 = math.tanh %24 : vector<16x32xf32>
    %26 = vector.shape_cast %25 : vector<16x32xf32> to vector<2x8x32xf32>
    %27 = vector.extract_strided_slice %26 {offsets = [0, 0, 0], sizes = [2, 1, 32], strides = [1, 1, 1]} : vector<2x8x32xf32> to vector<2x1x32xf32>
    %28 = vector.shape_cast %27 : vector<2x1x32xf32> to vector<2x32xf32>
    %cst_13 = arith.constant dense<0.000000e+00> : vector<2x32xf32>
    %29 = tpu.matmul %28, %2, %cst_13 {dimension_numbers = #tpu.dot_dimension_numbers<[1], [0], [0], [1], [0, 0, 1, 1], [], []>} : vector<2x32xf32>, vector<32x32xf32>, vector<2x32xf32> -> vector<2x32xf32>
    %30 = vector.broadcast %9 : vector<1x32xf32> to vector<2x32xf32>
    %31 = arith.addf %29, %30 : vector<2x32xf32>
    %32 = math.tanh %31 : vector<2x32xf32>
    %cst_14 = arith.constant dense<0.000000e+00> : vector<16x32xf32>
    %33 = tpu.matmul %25, %3, %cst_14 {dimension_numbers = #tpu.dot_dimension_numbers<[1], [0], [0], [1], [0, 0, 1, 1], [], []>} : vector<16x32xf32>, vector<32x32xf32>, vector<16x32xf32> -> vector<16x32xf32>
    %34 = vector.extract_strided_slice %33 {offsets = [0, 0], sizes = [16, 5], strides = [1, 1]} : vector<16x32xf32> to vector<16x5xf32>
    %35 = vector.shape_cast %34 : vector<16x5xf32> to vector<2x8x5xf32>
    %cst_15 = arith.constant 1.000000e+00 : f32
    %36 = vector.broadcast %cst_15 : f32 to vector<2x8xf32>
    %37 = arith.subf %13, %36 : vector<2x8xf32>
    %cst_16 = arith.constant 1.000000e+09 : f32
    %38 = vector.broadcast %cst_16 : f32 to vector<2x8xf32>
    %39 = arith.mulf %37, %38 : vector<2x8xf32>
    %40 = vector.shape_cast %39 : vector<2x8xf32> to vector<2x8x1xf32>
    %41 = vector.broadcast %40 : vector<2x8x1xf32> to vector<2x8x5xf32>
    %42 = arith.addf %35, %41 : vector<2x8x5xf32>
    %cst_17 = arith.constant dense<0xFF800000> : vector<2x5xf32>
    %43 = vector.multi_reduction <maximumf>, %42, %cst_17 [1] : vector<2x8x5xf32> to vector<2x5xf32>
    %44 = vector.shape_cast %43 : vector<2x5xf32> to vector<2x1x5xf32>
    %45 = vector.broadcast %44 : vector<2x1x5xf32> to vector<2x8x5xf32>
    %46 = arith.subf %42, %45 : vector<2x8x5xf32>
    %47 = math.exp %46 : vector<2x8x5xf32>
    %cst_18 = arith.constant dense<0.000000e+00> : vector<2x5xf32>
    %48 = vector.multi_reduction <add>, %47, %cst_18 [1] : vector<2x8x5xf32> to vector<2x5xf32>
    %49 = vector.shape_cast %48 : vector<2x5xf32> to vector<2x1x5xf32>
    %50 = tpu.reciprocal %49 {approx = true} : vector<2x1x5xf32> -> vector<2x1x5xf32>
    %cst_19 = arith.constant 2.000000e-01 : f32
    %51 = vector.broadcast %cst_19 : f32 to vector<2x1x5xf32>
    %52 = arith.mulf %50, %51 : vector<2x1x5xf32>
    %53 = vector.broadcast %52 : vector<2x1x5xf32> to vector<2x8x5xf32>
    %54 = arith.mulf %47, %53 : vector<2x8x5xf32>
    %cst_20 = arith.constant dense<0.000000e+00> : vector<2x8xf32>
    %55 = vector.multi_reduction <add>, %54, %cst_20 [2] : vector<2x8x5xf32> to vector<2x8xf32>
    %56 = vector.shape_cast %55 : vector<2x8xf32> to vector<2x8x1xf32>
    %57 = vector.broadcast %56 : vector<2x8x1xf32> to vector<2x8x32xf32>
    %58 = arith.mulf %57, %26 : vector<2x8x32xf32>
    %cst_21 = arith.constant dense<0.000000e+00> : vector<2x32xf32>
    %59 = vector.multi_reduction <add>, %58, %cst_21 [1] : vector<2x8x32xf32> to vector<2x32xf32>
    %cst_22 = arith.constant dense<0.000000e+00> : vector<2x32xf32>
    %60 = tpu.matmul %32, %4, %cst_22 {dimension_numbers = #tpu.dot_dimension_numbers<[1], [0], [0], [1], [0, 0, 1, 1], [], []>} : vector<2x32xf32>, vector<32x32xf32>, vector<2x32xf32> -> vector<2x32xf32>
    %cst_23 = arith.constant dense<0.000000e+00> : vector<2x32xf32>
    %61 = tpu.matmul %59, %5, %cst_23 {dimension_numbers = #tpu.dot_dimension_numbers<[1], [0], [0], [1], [0, 0, 1, 1], [], []>} : vector<2x32xf32>, vector<32x32xf32>, vector<2x32xf32> -> vector<2x32xf32>
    %62 = arith.addf %60, %61 : vector<2x32xf32>
    %63 = vector.broadcast %10 : vector<1x32xf32> to vector<2x32xf32>
    %64 = arith.addf %62, %63 : vector<2x32xf32>
    %cst_24 = arith.constant 0.000000e+00 : f32
    %65 = vector.broadcast %cst_24 : f32 to vector<2x32xf32>
    %66 = arith.maximumf %64, %65 : vector<2x32xf32>
    %cst_25 = arith.constant dense<0.000000e+00> : vector<2x32xf32>
    %67 = tpu.matmul %66, %6, %cst_25 {dimension_numbers = #tpu.dot_dimension_numbers<[1], [0], [0], [1], [0, 0, 1, 1], [], []>} : vector<2x32xf32>, vector<32x32xf32>, vector<2x32xf32> -> vector<2x32xf32>
    %68 = vector.broadcast %11 : vector<1x32xf32> to vector<2x32xf32>
    %69 = arith.addf %67, %68 : vector<2x32xf32>
    %70 = vector.extract_strided_slice %69 {offsets = [0, 0], sizes = [2, 3], strides = [1, 1]} : vector<2x32xf32> to vector<2x3xf32>
    %c0_26 = arith.constant 0 : index
    %c0_27 = arith.constant 0 : index
    %71 = vector.load %arg3[%c0_26, %c0_27] : memref<2x3xf32, #tpu.memory_space<vmem>>, vector<2x3xf32>
    tpu.vector_store %arg3[%c0_26, %c0_27], %70 {strides = array<i32>} : memref<2x3xf32, #tpu.memory_space<vmem>>, vector<2x3xf32>,
    return
  }
}

</mosaic_0001>

<llo_original>
// kernel: _bert_att_forward.1
$region0: #{_bert_att_forward.1}
  #allocation0 [shape = 'u32[]', space=smem, size = 0x4, offset = 0x4, fixed_abs, tag = 'smem constant byte address 0x4 - core index']
  #allocation1 [shape = 'u32[144,128]{1,0:T(1,128)}', space=vmem, size = 0x12000, scoped, tag = 'internal scratch']
  %s0 = inlined_call_operand.vmem [shape: s32[2,8], index: 0, kind: input, shape index: {}]
  %s1 = inlined_call_operand.vmem [shape: f32[2,8], index: 1, kind: input, shape index: {}]
  %s2 = inlined_call_operand.vmem [shape: f32[232,32], index: 2, kind: input, shape index: {}]
  %s3 = inlined_call_operand.hbm [shape: f32[2,3], index: 3, kind: output, shape index: {}]
  %s4 = sld [smem:[#allocation0]]
  $region22: #{_bert_att_forward.1} parent=0
    _
  %s6 = ssub.s32 1, %s4
  %s7 = scalar_select 0, %s6, %s4
  $region1: #{_bert_att_forward.1} parent=0
    #allocation2 [shape = 'u8[1024]{0}', space=vmem, size = 0x400, scoped, tag = 'output window, operand 0, single buffered']
    #allocation3 [shape = 's32[1]{0}', space=sflag, size = 0x4, scoped, tag = 'scoped memory for _bert_att_forward.1']
    %8 = vsyncpa [#allocation3], 0
    // Predicated region
    $region2: #{_bert_att_forward.1} parent=1 // pred_check
      _
    $region3: #{_bert_att_forward.1} parent=1 // pred_check_branch
      %10 = sbr.rel (0) target = $region5
    $region4: #{_bert_att_forward.1} parent=1 // pred_region
      _
    $region5: #{_bert_att_forward.1} parent=1 // pred_fallthru
      _
    // Predicated region
    $region6: #{_bert_att_forward.1} parent=1 // pred_check
      _
    $region7: #{_bert_att_forward.1} parent=1 // pred_check_branch
      %12 = sbr.rel (0) target = $region9
    $region8: #{_bert_att_forward.1} parent=1 // pred_region
      _
    $region9: #{_bert_att_forward.1} parent=1 // pred_fallthru
      _
    // Predicated region
    $region10: #{_bert_att_forward.1} parent=1 // pred_check
      _
    $region11: #{_bert_att_forward.1} parent=1 // pred_check_branch
      %14 = sbr.rel (0) target = $region13
    $region12: #{_bert_att_forward.1} parent=1 // pred_region
      _
    $region13: #{_bert_att_forward.1} parent=1 // pred_fallthru
      _
    %v15 = vld [vmem:[%s2] sm:$0xff]
    %v16 = vld [vmem:[%s2 + $0x8] sm:$0xff]
    %v17 = vld [vmem:[%s2 + $0x10] sm:$0xff]
    %v18 = vld [vmem:[%s2 + $0x18] sm:$0xff]
    %v19 = vld [vmem:[%s2 + $0x20] sm:$0xff]
    %v20 = vld [vmem:[%s2 + $0x28] sm:$0xff]
    %v21 = vld [vmem:[%s2 + $0x30] sm:$0xff]
    %v22 = vld [vmem:[%s2 + $0x38] sm:$0xff]
    %v23 = vld [vmem:[%s2 + $0x40] sm:$0xff]
    %v24 = vld [vmem:[%s2 + $0x48] sm:$0xff]
    %v25 = vld [vmem:[%s2 + $0x50] sm:$0xff]
    %v26 = vld [vmem:[%s2 + $0x58] sm:$0xff]
    %v27 = vld [vmem:[%s2 + $0x60] sm:$0xff]
    %v28 = vld [vmem:[%s2 + $0x68] sm:$0xff]
    %v29 = vld [vmem:[%s2 + $0x70] sm:$0xff]
    %v30 = vld [vmem:[%s2 + $0x78] sm:$0xff]
    %v31 = vld [vmem:[%s2 + $0x80] sm:$0xff]
    %v32 = vld [vmem:[%s2 + $0x88] sm:$0xff]
    %v33 = vld [vmem:[%s2 + $0x90] sm:$0xff]
    %v34 = vld [vmem:[%s2 + $0x98] sm:$0xff]
    %v35 = vld [vmem:[%s2 + $0xa0] sm:$0xff]
    %v36 = vld [vmem:[%s2 + $0xa8] sm:$0xff]
    %v37 = vld [vmem:[%s2 + $0xb0] sm:$0xff]
    %v38 = vld [vmem:[%s2 + $0xb8] sm:$0xff]
    %v39 = vld [vmem:[%s2 + $0xc0] sm:$0xff]
    %v40 = vld [vmem:[%s2 + $0xc8] sm:$0xff]
    %v41 = vld [vmem:[%s2 + $0xd0] sm:$0xff]
    %v42 = vld [vmem:[%s2 + $0xd8] sm:$0xff]
    %v43 = vld [vmem:[%s2 + $0xe0] sm:$0xff]
    %v44 = vld [vmem:[%s0] sm:$0x3]
    %v45 = vld [vmem:[%s1] sm:$0x3]
    %v46 = vlaneseq
    %v47 = vand.u32 %v46, 127
    %v48 = vlaneseq
    %v49 = vshrl.u32 %v48, 7
    %v50 = vsub.s32 0, %v49
    %v51 = vrot.slane %v44, %v50
    %53 = vbcast.lane.b32.xlu0 %v51, 256
    %v54 = vpop.permute.xlu0 %53
    %v55 = vlaneseq
    %v56 = vshrl.u32 %v55, 7
    %v57 = vsub.s32 1, %v56
    %v58 = vrot.slane %v44, %v57
    %60 = vbcast.lane.b32.xlu0 %v58, 256
    %v61 = vpop.permute.xlu0 %60
    %vm62 = vcmp.eq.s32.totalorder %v54, %v47
    %vm63 = vcmp.eq.s32.totalorder %v61, %v47
    %v64 = vsel %vm62, 1, 0
    %v65 = vsel %vm63, 1, 0
    %v66 = vcvt.s32.f32 %v64
    %v67 = vcvt.s32.f32 %v65
    %vm68 = vcmask 261120
    %v70 = vsel %vm68, %v66, 0
    %v73 = vsel %vm68, %v67, 0
    %75 = vmatprep.subr.mxu0 0.0
    %76 = vmatpush1.msra.mxu0 0.0
    %77 = vmatprep.subr.mxu0 0.0
    %78 = vmatpush1.msra.mxu0 0.0
    %79 = vmatprep.subr.mxu0 0.0
    %80 = vmatpush1.msra.mxu0 0.0
    %81 = vmatprep.subr.mxu0 0.0
    %82 = vmatpush1.msra.mxu0 0.0
    %83 = vmatprep.subr.mxu0 0.0
    %84 = vmatpush1.msra.mxu0 0.0
    %85 = vmatprep.subr.mxu0 0.0
    %86 = vmatpush1.msra.mxu0 0.0
    %87 = vmatprep.subr.mxu0 0.0
    %88 = vmatpush1.msra.mxu0 0.0
    %89 = vmatprep.subr.mxu0 0.0
    %90 = vmatpush1.msra.mxu0 0.0
    %91 = vmatprep.subr.mxu0 0.0
    %92 = vmatpush1.msra.mxu0 0.0
    %93 = vmatprep.subr.mxu0 0.0
    %94 = vmatpush1.msra.mxu0 0.0
    %95 = vmatprep.subr.mxu0 0.0
    %96 = vmatpush1.msra.mxu0 0.0
    %97 = vmatprep.subr.mxu0 0.0
    %98 = vmatpush1.msra.mxu0 0.0
    %99 = vmatprep.subr.mxu0 0.0
    %100 = vmatpush1.msra.mxu0 %v18
    %101 = vmatprep.subr.mxu0 0.0
    %102 = vmatpush1.msra.mxu0 %v17
    %103 = vmatprep.subr.mxu0 0.0
    %104 = vmatpush1.msra.mxu0 %v16
    %105 = vmatprep.subr.mxu0 0.0
    %106 = vmatpush1.msra.mxu0 %v15
    %107 = vmatprep.subr.mxu0 0.0
    %108 = vmatpush2.msra.mxu0 0.0
    %109 = vmatprep.subr.mxu0 0.0
    %110 = vmatpush2.msra.mxu0 0.0
    %111 = vmatprep.subr.mxu0 0.0
    %112 = vmatpush2.msra.mxu0 0.0
    %113 = vmatprep.subr.mxu0 0.0
    %114 = vmatpush2.msra.mxu0 0.0
    %115 = vmatprep.subr.mxu0 0.0
    %116 = vmatpush2.msra.mxu0 0.0
    %117 = vmatprep.subr.mxu0 0.0
    %118 = vmatpush2.msra.mxu0 0.0
    %119 = vmatprep.subr.mxu0 0.0
    %120 = vmatpush2.msra.mxu0 0.0
    %121 = vmatprep.subr.mxu0 0.0
    %122 = vmatpush2.msra.mxu0 0.0
    %123 = vmatprep.subr.mxu0 0.0
    %124 = vmatpush2.msra.mxu0 0.0
    %125 = vmatprep.subr.mxu0 0.0
    %126 = vmatpush2.msra.mxu0 0.0
    %127 = vmatprep.subr.mxu0 0.0
    %128 = vmatpush2.msra.mxu0 0.0
    %129 = vmatprep.subr.mxu0 0.0
    %130 = vmatpush2.msra.mxu0 0.0
    %131 = vmatprep.subr.mxu0 0.0
    %132 = vmatpush2.msra.mxu0 0.0
    %133 = vmatprep.subr.mxu0 0.0
    %134 = vmatpush2.msra.mxu0 0.0
    %135 = vmatprep.subr.mxu0 0.0
    %136 = vmatpush2.msra.mxu0 0.0
    %137 = vmatprep.subr.mxu0 0.0
    %138 = vmatpush2.msra.mxu0 0.0
    %139 = vmatprep.mubr.f32.mxu0 0.0
    %140 = vmatmul.mubr.f32.gmra.mxu0 %v70
    %v141 = vpop.f32.mrf.mxu0
    %v142 = vadd.f32 0.0, %v141
    %v143 = vpop.f32.mrf.mxu0
    %144 = vmatprep.mubr.f32.mxu0 0.0
    %145 = vmatmul.mubr.f32.gmra.mxu0 %v73
    %v146 = vpop.f32.mrf.mxu0
    %v147 = vadd.f32 0.0, %v146
    %v148 = vpop.f32.mrf.mxu0
    %149 = vdwg.mxu0
    %v150 = vlaneseq
    %v151 = vshrl.u32 %v150, 7
    %v152 = vsub.s32 0, %v151
    %v153 = vrot.slane %v43, %v152
    %v155 = vsel %vm68, %v142, 0
    %v158 = vsel %vm68, %v147, 0
    %160 = vmatprep.subr.mxu0 0.0
    %161 = vmatpush1.msra.mxu0 0.0
    %162 = vmatprep.subr.mxu0 0.0
    %163 = vmatpush1.msra.mxu0 0.0
    %164 = vmatprep.subr.mxu0 0.0
    %165 = vmatpush1.msra.mxu0 0.0
    %166 = vmatprep.subr.mxu0 0.0
    %167 = vmatpush1.msra.mxu0 0.0
    %168 = vmatprep.subr.mxu0 0.0
    %169 = vmatpush1.msra.mxu0 0.0
    %170 = vmatprep.subr.mxu0 0.0
    %171 = vmatpush1.msra.mxu0 0.0
    %172 = vmatprep.subr.mxu0 0.0
    %173 = vmatpush1.msra.mxu0 0.0
    %174 = vmatprep.subr.mxu0 0.0
    %175 = vmatpush1.msra.mxu0 0.0
    %176 = vmatprep.subr.mxu0 0.0
    %177 = vmatpush1.msra.mxu0 0.0
    %178 = vmatprep.subr.mxu0 0.0
    %179 = vmatpush1.msra.mxu0 0.0
    %180 = vmatprep.subr.mxu0 0.0
    %181 = vmatpush1.msra.mxu0 0.0
    %182 = vmatprep.subr.mxu0 0.0
    %183 = vmatpush1.msra.mxu0 0.0
    %184 = vmatprep.subr.mxu0 0.0
    %185 = vmatpush1.msra.mxu0 %v22
    %186 = vmatprep.subr.mxu0 0.0
    %187 = vmatpush1.msra.mxu0 %v21
    %188 = vmatprep.subr.mxu0 0.0
    %189 = vmatpush1.msra.mxu0 %v20
    %190 = vmatprep.subr.mxu0 0.0
    %191 = vmatpush1.msra.mxu0 %v19
    %192 = vmatprep.subr.mxu0 0.0
    %193 = vmatpush2.msra.mxu0 0.0
    %194 = vmatprep.subr.mxu0 0.0
    %195 = vmatpush2.msra.mxu0 0.0
    %196 = vmatprep.subr.mxu0 0.0
    %197 = vmatpush2.msra.mxu0 0.0
    %198 = vmatprep.subr.mxu0 0.0
    %199 = vmatpush2.msra.mxu0 0.0
    %200 = vmatprep.subr.mxu0 0.0
    %201 = vmatpush2.msra.mxu0 0.0
    %202 = vmatprep.subr.mxu0 0.0
    %203 = vmatpush2.msra.mxu0 0.0
    %204 = vmatprep.subr.mxu0 0.0
    %205 = vmatpush2.msra.mxu0 0.0
    %206 = vmatprep.subr.mxu0 0.0
    %207 = vmatpush2.msra.mxu0 0.0
    %208 = vmatprep.subr.mxu0 0.0
    %209 = vmatpush2.msra.mxu0 0.0
    %210 = vmatprep.subr.mxu0 0.0
    %211 = vmatpush2.msra.mxu0 0.0
    %212 = vmatprep.subr.mxu0 0.0
    %213 = vmatpush2.msra.mxu0 0.0
    %214 = vmatprep.subr.mxu0 0.0
    %215 = vmatpush2.msra.mxu0 0.0
    %216 = vmatprep.subr.mxu0 0.0
    %217 = vmatpush2.msra.mxu0 0.0
    %218 = vmatprep.subr.mxu0 0.0
    %219 = vmatpush2.msra.mxu0 0.0
    %220 = vmatprep.subr.mxu0 0.0
    %221 = vmatpush2.msra.mxu0 0.0
    %222 = vmatprep.subr.mxu0 0.0
    %223 = vmatpush2.msra.mxu0 0.0
    %224 = vmatprep.mubr.f32.mxu0 0.0
    %225 = vmatmul.mubr.f32.gmra.mxu0 %v155
    %v226 = vpop.f32.mrf.mxu0
    %v227 = vadd.f32 %v153, %v226
    %v228 = vpop.f32.mrf.mxu0
    %229 = vmatprep.mubr.f32.mxu0 0.0
    %230 = vmatmul.mubr.f32.gmra.mxu0 %v158
    %v231 = vpop.f32.mrf.mxu0
    %v232 = vadd.f32 %v153, %v231
    %v233 = vpop.f32.mrf.mxu0
    %234 = vdwg.mxu0
    %v235 = vtanh.pop %v227
    %v236 = vtanh.pop %v232
    %v237 = vlaneseq
    %v238 = vshrl.u32 %v237, 7
    %v239 = vsub.s32 1, %v238
    %v240 = vrot.slane %v43, %v239
    %v243 = vrot.slane %v236, 7
    %vm244 = vcmask 1041409
    %v245 = vsel %vm244, %v243, %v235
    %v246 = vsel %vm68, %v245, 0
    %248 = vmatprep.subr.mxu0 0.0
    %249 = vmatpush1.msra.mxu0 0.0
    %250 = vmatprep.subr.mxu0 0.0
    %251 = vmatpush1.msra.mxu0 0.0
    %252 = vmatprep.subr.mxu0 0.0
    %253 = vmatpush1.msra.mxu0 0.0
    %254 = vmatprep.subr.mxu0 0.0
    %255 = vmatpush1.msra.mxu0 0.0
    %256 = vmatprep.subr.mxu0 0.0
    %257 = vmatpush1.msra.mxu0 0.0
    %258 = vmatprep.subr.mxu0 0.0
    %259 = vmatpush1.msra.mxu0 0.0
    %260 = vmatprep.subr.mxu0 0.0
    %261 = vmatpush1.msra.mxu0 0.0
    %262 = vmatprep.subr.mxu0 0.0
    %263 = vmatpush1.msra.mxu0 0.0
    %264 = vmatprep.subr.mxu0 0.0
    %265 = vmatpush1.msra.mxu0 0.0
    %266 = vmatprep.subr.mxu0 0.0
    %267 = vmatpush1.msra.mxu0 0.0
    %268 = vmatprep.subr.mxu0 0.0
    %269 = vmatpush1.msra.mxu0 0.0
    %270 = vmatprep.subr.mxu0 0.0
    %271 = vmatpush1.msra.mxu0 0.0
    %272 = vmatprep.subr.mxu0 0.0
    %273 = vmatpush1.msra.mxu0 %v26
    %274 = vmatprep.subr.mxu0 0.0
    %275 = vmatpush1.msra.mxu0 %v25
    %276 = vmatprep.subr.mxu0 0.0
    %277 = vmatpush1.msra.mxu0 %v24
    %278 = vmatprep.subr.mxu0 0.0
    %279 = vmatpush1.msra.mxu0 %v23
    %280 = vmatprep.subr.mxu0 0.0
    %281 = vmatpush2.msra.mxu0 0.0
    %282 = vmatprep.subr.mxu0 0.0
    %283 = vmatpush2.msra.mxu0 0.0
    %284 = vmatprep.subr.mxu0 0.0
    %285 = vmatpush2.msra.mxu0 0.0
    %286 = vmatprep.subr.mxu0 0.0
    %287 = vmatpush2.msra.mxu0 0.0
    %288 = vmatprep.subr.mxu0 0.0
    %289 = vmatpush2.msra.mxu0 0.0
    %290 = vmatprep.subr.mxu0 0.0
    %291 = vmatpush2.msra.mxu0 0.0
    %292 = vmatprep.subr.mxu0 0.0
    %293 = vmatpush2.msra.mxu0 0.0
    %294 = vmatprep.subr.mxu0 0.0
    %295 = vmatpush2.msra.mxu0 0.0
    %296 = vmatprep.subr.mxu0 0.0
    %297 = vmatpush2.msra.mxu0 0.0
    %298 = vmatprep.subr.mxu0 0.0
    %299 = vmatpush2.msra.mxu0 0.0
    %300 = vmatprep.subr.mxu0 0.0
    %301 = vmatpush2.msra.mxu0 0.0
    %302 = vmatprep.subr.mxu0 0.0
    %303 = vmatpush2.msra.mxu0 0.0
    %304 = vmatprep.subr.mxu0 0.0
    %305 = vmatpush2.msra.mxu0 0.0
    %306 = vmatprep.subr.mxu0 0.0
    %307 = vmatpush2.msra.mxu0 0.0
    %308 = vmatprep.subr.mxu0 0.0
    %309 = vmatpush2.msra.mxu0 0.0
    %310 = vmatprep.subr.mxu0 0.0
    %311 = vmatpush2.msra.mxu0 0.0
    %312 = vmatprep.mubr.f32.mxu0 0.0
    %313 = vmatmul.mubr.f32.gmra.mxu0 %v246
    %v314 = vpop.f32.mrf.mxu0
    %v315 = vadd.f32 %v240, %v314
    %v316 = vpop.f32.mrf.mxu0
    %317 = vdwg.mxu0
    %v318 = vtanh.pop %v315
    %v319 = vsel %vm68, %v235, 0
    %v321 = vsel %vm68, %v236, 0
    %323 = vmatprep.subr.mxu0 0.0
    %324 = vmatpush1.msra.mxu0 0.0
    %325 = vmatprep.subr.mxu0 0.0
    %326 = vmatpush1.msra.mxu0 0.0
    %327 = vmatprep.subr.mxu0 0.0
    %328 = vmatpush1.msra.mxu0 0.0
    %329 = vmatprep.subr.mxu0 0.0
    %330 = vmatpush1.msra.mxu0 0.0
    %331 = vmatprep.subr.mxu0 0.0
    %332 = vmatpush1.msra.mxu0 0.0
    %333 = vmatprep.subr.mxu0 0.0
    %334 = vmatpush1.msra.mxu0 0.0
    %335 = vmatprep.subr.mxu0 0.0
    %336 = vmatpush1.msra.mxu0 0.0
    %337 = vmatprep.subr.mxu0 0.0
    %338 = vmatpush1.msra.mxu0 0.0
    %339 = vmatprep.subr.mxu0 0.0
    %340 = vmatpush1.msra.mxu0 0.0
    %341 = vmatprep.subr.mxu0 0.0
    %342 = vmatpush1.msra.mxu0 0.0
    %343 = vmatprep.subr.mxu0 0.0
    %344 = vmatpush1.msra.mxu0 0.0
    %345 = vmatprep.subr.mxu0 0.0
    %346 = vmatpush1.msra.mxu0 0.0
    %347 = vmatprep.subr.mxu0 0.0
    %348 = vmatpush1.msra.mxu0 %v30
    %349 = vmatprep.subr.mxu0 0.0
    %350 = vmatpush1.msra.mxu0 %v29
    %351 = vmatprep.subr.mxu0 0.0
    %352 = vmatpush1.msra.mxu0 %v28
    %353 = vmatprep.subr.mxu0 0.0
    %354 = vmatpush1.msra.mxu0 %v27
    %355 = vmatprep.subr.mxu0 0.0
    %356 = vmatpush2.msra.mxu0 0.0
    %357 = vmatprep.subr.mxu0 0.0
    %358 = vmatpush2.msra.mxu0 0.0
    %359 = vmatprep.subr.mxu0 0.0
    %360 = vmatpush2.msra.mxu0 0.0
    %361 = vmatprep.subr.mxu0 0.0
    %362 = vmatpush2.msra.mxu0 0.0
    %363 = vmatprep.subr.mxu0 0.0
    %364 = vmatpush2.msra.mxu0 0.0
    %365 = vmatprep.subr.mxu0 0.0
    %366 = vmatpush2.msra.mxu0 0.0
    %367 = vmatprep.subr.mxu0 0.0
    %368 = vmatpush2.msra.mxu0 0.0
    %369 = vmatprep.subr.mxu0 0.0
    %370 = vmatpush2.msra.mxu0 0.0
    %371 = vmatprep.subr.mxu0 0.0
    %372 = vmatpush2.msra.mxu0 0.0
    %373 = vmatprep.subr.mxu0 0.0
    %374 = vmatpush2.msra.mxu0 0.0
    %375 = vmatprep.subr.mxu0 0.0
    %376 = vmatpush2.msra.mxu0 0.0
    %377 = vmatprep.subr.mxu0 0.0
    %378 = vmatpush2.msra.mxu0 0.0
    %379 = vmatprep.subr.mxu0 0.0
    %380 = vmatpush2.msra.mxu0 0.0
    %381 = vmatprep.subr.mxu0 0.0
    %382 = vmatpush2.msra.mxu0 0.0
    %383 = vmatprep.subr.mxu0 0.0
    %384 = vmatpush2.msra.mxu0 0.0
    %385 = vmatprep.subr.mxu0 0.0
    %386 = vmatpush2.msra.mxu0 0.0
    %387 = vmatprep.mubr.f32.mxu0 0.0
    %388 = vmatmul.mubr.f32.gmra.mxu0 %v319
    %v389 = vpop.f32.mrf.mxu0
    %v390 = vadd.f32 0.0, %v389
    %v391 = vpop.f32.mrf.mxu0
    %392 = vmatprep.mubr.f32.mxu0 0.0
    %393 = vmatmul.mubr.f32.gmra.mxu0 %v321
    %v394 = vpop.f32.mrf.mxu0
    %v395 = vadd.f32 0.0, %v394
    %v396 = vpop.f32.mrf.mxu0
    %397 = vdwg.mxu0
    %v398 = vsub.f32 %v45, 1.0
    %v399 = vmul.f32 %v398, 1e+09
    %v400 = vlaneseq
    %v401 = vshrl.u32 %v400, 7
    %v402 = vsub.s32 0, %v401
    %v403 = vrot.slane %v399, %v402
    %405 = vbcast.lane.b32.xlu0 %v403, 256
    %v406 = vpop.permute.xlu0 %405
    %v407 = vlaneseq
    %v408 = vshrl.u32 %v407, 7
    %v409 = vsub.s32 1, %v408
    %v410 = vrot.slane %v399, %v409
    %412 = vbcast.lane.b32.xlu0 %v410, 256
    %v413 = vpop.permute.xlu0 %412
    %v414 = vadd.f32 %v390, %v406
    %v415 = vadd.f32 %v395, %v413
    %vm416 = vcmask 39936
    %v417 = vsel %vm416, %v414, -inf
    %v418 = vrot.slane %v417, 4
    %v419 = vmax.f32 %v417, %v418
    %v420 = vrot.slane %v419, 2
    %v421 = vmax.f32 %v419, %v420
    %v422 = vrot.slane %v421, 1
    %v423 = vmax.f32 %v421, %v422
    %v424 = vsel %vm416, %v415, -inf
    %v425 = vrot.slane %v424, 4
    %v426 = vmax.f32 %v424, %v425
    %v427 = vrot.slane %v426, 2
    %v428 = vmax.f32 %v426, %v427
    %v429 = vrot.slane %v428, 1
    %v430 = vmax.f32 %v428, %v429
    %v431 = vsub.f32 %v414, %v423
    %v432 = vsub.f32 %v415, %v430
    %v433 = vmul.f32 %v431, 1.442695
    %v434 = vpow.pop %v433
    %v435 = vmul.f32 %v432, 1.442695
    %v436 = vpow.pop %v435
    %v437 = vsel %vm416, %v434, 0.0
    %v438 = vrot.slane %v437, 4
    %v439 = vadd.f32 %v437, %v438
    %v440 = vrot.slane %v439, 2
    %v441 = vadd.f32 %v439, %v440
    %v442 = vrot.slane %v441, 1
    %v443 = vadd.f32 %v441, %v442
    %v444 = vsel %vm416, %v436, 0.0
    %v445 = vrot.slane %v444, 4
    %v446 = vadd.f32 %v444, %v445
    %v447 = vrot.slane %v446, 2
    %v448 = vadd.f32 %v446, %v447
    %v449 = vrot.slane %v448, 1
    %v450 = vadd.f32 %v448, %v449
    %v451 = vrcp.pop %v443
    %v452 = vrcp.pop %v450
    %v453 = vmul.f32 %v451, 0.2
    %v454 = vmul.f32 %v452, 0.2
    %v455 = vmul.f32 %v434, %v453
    %v456 = vmul.f32 %v436, %v454
    %v457 = vsel %vm416, %v455, 0.0
    %458 = vadd.xlane.f32.xlu0 %v457
    %v459 = vpop.xlane.xlu0 %458
    %v460 = vsel %vm416, %v456, 0.0
    %461 = vadd.xlane.f32.xlu0 %v460
    %v462 = vpop.xlane.xlu0 %461
    %v463 = vmul.f32 %v459, %v235
    %v464 = vmul.f32 %v462, %v236
    %v465 = vsel %vm68, %v463, 0.0
    %v466 = vrot.slane %v465, 4
    %v467 = vadd.f32 %v465, %v466
    %v468 = vrot.slane %v467, 2
    %v469 = vadd.f32 %v467, %v468
    %v470 = vrot.slane %v469, 1
    %v471 = vadd.f32 %v469, %v470
    %v472 = vsel %vm68, %v464, 0.0
    %v473 = vrot.slane %v472, 4
    %v474 = vadd.f32 %v472, %v473
    %v475 = vrot.slane %v474, 2
    %v476 = vadd.f32 %v474, %v475
    %v477 = vrot.slane %v476, 1
    %v478 = vadd.f32 %v476, %v477
    %v481 = vsel %vm244, %v478, %v471
    %v482 = vsel %vm68, %v481, 0
    %484 = vmatprep.subr.mxu0 0.0
    %485 = vmatpush1.msra.mxu0 0.0
    %486 = vmatprep.subr.mxu0 0.0
    %487 = vmatpush1.msra.mxu0 0.0
    %488 = vmatprep.subr.mxu0 0.0
    %489 = vmatpush1.msra.mxu0 0.0
    %490 = vmatprep.subr.mxu0 0.0
    %491 = vmatpush1.msra.mxu0 0.0
    %492 = vmatprep.subr.mxu0 0.0
    %493 = vmatpush1.msra.mxu0 0.0
    %494 = vmatprep.subr.mxu0 0.0
    %495 = vmatpush1.msra.mxu0 0.0
    %496 = vmatprep.subr.mxu0 0.0
    %497 = vmatpush1.msra.mxu0 0.0
    %498 = vmatprep.subr.mxu0 0.0
    %499 = vmatpush1.msra.mxu0 0.0
    %500 = vmatprep.subr.mxu0 0.0
    %501 = vmatpush1.msra.mxu0 0.0
    %502 = vmatprep.subr.mxu0 0.0
    %503 = vmatpush1.msra.mxu0 0.0
    %504 = vmatprep.subr.mxu0 0.0
    %505 = vmatpush1.msra.mxu0 0.0
    %506 = vmatprep.subr.mxu0 0.0
    %507 = vmatpush1.msra.mxu0 0.0
    %508 = vmatprep.subr.mxu0 0.0
    %509 = vmatpush1.msra.mxu0 %v38
    %510 = vmatprep.subr.mxu0 0.0
    %511 = vmatpush1.msra.mxu0 %v37
    %512 = vmatprep.subr.mxu0 0.0
    %513 = vmatpush1.msra.mxu0 %v36
    %514 = vmatprep.subr.mxu0 0.0
    %515 = vmatpush1.msra.mxu0 %v35
    %516 = vmatprep.subr.mxu0 0.0
    %517 = vmatpush2.msra.mxu0 0.0
    %518 = vmatprep.subr.mxu0 0.0
    %519 = vmatpush2.msra.mxu0 0.0
    %520 = vmatprep.subr.mxu0 0.0
    %521 = vmatpush2.msra.mxu0 0.0
    %522 = vmatprep.subr.mxu0 0.0
    %523 = vmatpush2.msra.mxu0 0.0
    %524 = vmatprep.subr.mxu0 0.0
    %525 = vmatpush2.msra.mxu0 0.0
    %526 = vmatprep.subr.mxu0 0.0
    %527 = vmatpush2.msra.mxu0 0.0
    %528 = vmatprep.subr.mxu0 0.0
    %529 = vmatpush2.msra.mxu0 0.0
    %530 = vmatprep.subr.mxu0 0.0
    %531 = vmatpush2.msra.mxu0 0.0
    %532 = vmatprep.subr.mxu0 0.0
    %533 = vmatpush2.msra.mxu0 0.0
    %534 = vmatprep.subr.mxu0 0.0
    %535 = vmatpush2.msra.mxu0 0.0
    %536 = vmatprep.subr.mxu0 0.0
    %537 = vmatpush2.msra.mxu0 0.0
    %538 = vmatprep.subr.mxu0 0.0
    %539 = vmatpush2.msra.mxu0 0.0
    %540 = vmatprep.subr.mxu0 0.0
    %541 = vmatpush2.msra.mxu0 0.0
    %542 = vmatprep.subr.mxu0 0.0
    %543 = vmatpush2.msra.mxu0 0.0
    %544 = vmatprep.subr.mxu0 0.0
    %545 = vmatpush2.msra.mxu0 0.0
    %546 = vmatprep.subr.mxu0 0.0
    %547 = vmatpush2.msra.mxu0 0.0
    %548 = vmatprep.mubr.f32.mxu0 0.0
    %549 = vmatmul.mubr.f32.gmra.mxu0 %v482
    %v550 = vpop.f32.mrf.mxu0
    %v551 = vadd.f32 0.0, %v550
    %v552 = vpop.f32.mrf.mxu0
    %553 = vdwg.mxu0
    %v555 = vsel %vm68, %v318, 0
    %557 = vmatprep.subr.mxu0 0.0
    %558 = vmatpush1.msra.mxu0 0.0
    %559 = vmatprep.subr.mxu0 0.0
    %560 = vmatpush1.msra.mxu0 0.0
    %561 = vmatprep.subr.mxu0 0.0
    %562 = vmatpush1.msra.mxu0 0.0
    %563 = vmatprep.subr.mxu0 0.0
    %564 = vmatpush1.msra.mxu0 0.0
    %565 = vmatprep.subr.mxu0 0.0
    %566 = vmatpush1.msra.mxu0 0.0
    %567 = vmatprep.subr.mxu0 0.0
    %568 = vmatpush1.msra.mxu0 0.0
    %569 = vmatprep.subr.mxu0 0.0
    %570 = vmatpush1.msra.mxu0 0.0
    %571 = vmatprep.subr.mxu0 0.0
    %572 = vmatpush1.msra.mxu0 0.0
    %573 = vmatprep.subr.mxu0 0.0
    %574 = vmatpush1.msra.mxu0 0.0
    %575 = vmatprep.subr.mxu0 0.0
    %576 = vmatpush1.msra.mxu0 0.0
    %577 = vmatprep.subr.mxu0 0.0
    %578 = vmatpush1.msra.mxu0 0.0
    %579 = vmatprep.subr.mxu0 0.0
    %580 = vmatpush1.msra.mxu0 0.0
    %581 = vmatprep.subr.mxu0 0.0
    %582 = vmatpush1.msra.mxu0 %v34
    %583 = vmatprep.subr.mxu0 0.0
    %584 = vmatpush1.msra.mxu0 %v33
    %585 = vmatprep.subr.mxu0 0.0
    %586 = vmatpush1.msra.mxu0 %v32
    %587 = vmatprep.subr.mxu0 0.0
    %588 = vmatpush1.msra.mxu0 %v31
    %589 = vmatprep.subr.mxu0 0.0
    %590 = vmatpush2.msra.mxu0 0.0
    %591 = vmatprep.subr.mxu0 0.0
    %592 = vmatpush2.msra.mxu0 0.0
    %593 = vmatprep.subr.mxu0 0.0
    %594 = vmatpush2.msra.mxu0 0.0
    %595 = vmatprep.subr.mxu0 0.0
    %596 = vmatpush2.msra.mxu0 0.0
    %597 = vmatprep.subr.mxu0 0.0
    %598 = vmatpush2.msra.mxu0 0.0
    %599 = vmatprep.subr.mxu0 0.0
    %600 = vmatpush2.msra.mxu0 0.0
    %601 = vmatprep.subr.mxu0 0.0
    %602 = vmatpush2.msra.mxu0 0.0
    %603 = vmatprep.subr.mxu0 0.0
    %604 = vmatpush2.msra.mxu0 0.0
    %605 = vmatprep.subr.mxu0 0.0
    %606 = vmatpush2.msra.mxu0 0.0
    %607 = vmatprep.subr.mxu0 0.0
    %608 = vmatpush2.msra.mxu0 0.0
    %609 = vmatprep.subr.mxu0 0.0
    %610 = vmatpush2.msra.mxu0 0.0
    %611 = vmatprep.subr.mxu0 0.0
    %612 = vmatpush2.msra.mxu0 0.0
    %613 = vmatprep.subr.mxu0 0.0
    %614 = vmatpush2.msra.mxu0 0.0
    %615 = vmatprep.subr.mxu0 0.0
    %616 = vmatpush2.msra.mxu0 0.0
    %617 = vmatprep.subr.mxu0 0.0
    %618 = vmatpush2.msra.mxu0 0.0
    %619 = vmatprep.subr.mxu0 0.0
    %620 = vmatpush2.msra.mxu0 0.0
    %621 = vmatprep.mubr.f32.mxu0 0.0
    %622 = vmatmul.mubr.f32.gmra.mxu0 %v555
    %v623 = vpop.f32.mrf.mxu0
    %v624 = vadd.f32 %v551, %v623
    %v625 = vpop.f32.mrf.mxu0
    %626 = vdwg.mxu0
    %v627 = vlaneseq
    %v628 = vshrl.u32 %v627, 7
    %v629 = vsub.s32 2, %v628
    %v630 = vrot.slane %v43, %v629
    %v631 = vadd.f32 %v624, %v630
    %v632 = vmax.f32 %v631, 0.0
    %v633 = vlaneseq
    %v634 = vshrl.u32 %v633, 7
    %v635 = vsub.s32 3, %v634
    %v636 = vrot.slane %v43, %v635
    %v638 = vsel %vm68, %v632, 0
    %640 = vmatprep.subr.mxu0 0.0
    %641 = vmatpush1.msra.mxu0 0.0
    %642 = vmatprep.subr.mxu0 0.0
    %643 = vmatpush1.msra.mxu0 0.0
    %644 = vmatprep.subr.mxu0 0.0
    %645 = vmatpush1.msra.mxu0 0.0
    %646 = vmatprep.subr.mxu0 0.0
    %647 = vmatpush1.msra.mxu0 0.0
    %648 = vmatprep.subr.mxu0 0.0
    %649 = vmatpush1.msra.mxu0 0.0
    %650 = vmatprep.subr.mxu0 0.0
    %651 = vmatpush1.msra.mxu0 0.0
    %652 = vmatprep.subr.mxu0 0.0
    %653 = vmatpush1.msra.mxu0 0.0
    %654 = vmatprep.subr.mxu0 0.0
    %655 = vmatpush1.msra.mxu0 0.0
    %656 = vmatprep.subr.mxu0 0.0
    %657 = vmatpush1.msra.mxu0 0.0
    %658 = vmatprep.subr.mxu0 0.0
    %659 = vmatpush1.msra.mxu0 0.0
    %660 = vmatprep.subr.mxu0 0.0
    %661 = vmatpush1.msra.mxu0 0.0
    %662 = vmatprep.subr.mxu0 0.0
    %663 = vmatpush1.msra.mxu0 0.0
    %664 = vmatprep.subr.mxu0 0.0
    %665 = vmatpush1.msra.mxu0 %v42
    %666 = vmatprep.subr.mxu0 0.0
    %667 = vmatpush1.msra.mxu0 %v41
    %668 = vmatprep.subr.mxu0 0.0
    %669 = vmatpush1.msra.mxu0 %v40
    %670 = vmatprep.subr.mxu0 0.0
    %671 = vmatpush1.msra.mxu0 %v39
    %672 = vmatprep.subr.mxu0 0.0
    %673 = vmatpush2.msra.mxu0 0.0
    %674 = vmatprep.subr.mxu0 0.0
    %675 = vmatpush2.msra.mxu0 0.0
    %676 = vmatprep.subr.mxu0 0.0
    %677 = vmatpush2.msra.mxu0 0.0
    %678 = vmatprep.subr.mxu0 0.0
    %679 = vmatpush2.msra.mxu0 0.0
    %680 = vmatprep.subr.mxu0 0.0
    %681 = vmatpush2.msra.mxu0 0.0
    %682 = vmatprep.subr.mxu0 0.0
    %683 = vmatpush2.msra.mxu0 0.0
    %684 = vmatprep.subr.mxu0 0.0
    %685 = vmatpush2.msra.mxu0 0.0
    %686 = vmatprep.subr.mxu0 0.0
    %687 = vmatpush2.msra.mxu0 0.0
    %688 = vmatprep.subr.mxu0 0.0
    %689 = vmatpush2.msra.mxu0 0.0
    %690 = vmatprep.subr.mxu0 0.0
    %691 = vmatpush2.msra.mxu0 0.0
    %692 = vmatprep.subr.mxu0 0.0
    %693 = vmatpush2.msra.mxu0 0.0
    %694 = vmatprep.subr.mxu0 0.0
    %695 = vmatpush2.msra.mxu0 0.0
    %696 = vmatprep.subr.mxu0 0.0
    %697 = vmatpush2.msra.mxu0 0.0
    %698 = vmatprep.subr.mxu0 0.0
    %699 = vmatpush2.msra.mxu0 0.0
    %700 = vmatprep.subr.mxu0 0.0
    %701 = vmatpush2.msra.mxu0 0.0
    %702 = vmatprep.subr.mxu0 0.0
    %703 = vmatpush2.msra.mxu0 0.0
    %704 = vmatprep.mubr.f32.mxu0 0.0
    %705 = vmatmul.mubr.f32.gmra.mxu0 %v638
    %v706 = vpop.f32.mrf.mxu0
    %v707 = vadd.f32 %v636, %v706
    %v708 = vpop.f32.mrf.mxu0
    %709 = vdwg.mxu0
    %vm710 = vcmask 17408
    %711 = vst.msk [vmem:[#allocation2] sm:$0x3] %vm710, %v707
    // Predicated region
    $region14: #{_bert_att_forward.1} parent=1 // pred_check
      _
    $region15: #{_bert_att_forward.1} parent=1 // pred_check_branch
      %713 = sbr.rel (0) target = $region17
    $region16: #{_bert_att_forward.1} parent=1 // pred_region
      %s715 = ssub.s32 32, 32
      %716 = vsyncadd [#allocation3], %s715
      %s718 = sshll.u32 [#allocation2], 4
      %s719 = int_to_ptr.vmem [resolvable:$true] %s718
      %721 = dma.vmem_to_hbm [thread:$0]  %s719, 32, %s3, [#allocation3]
    $region17: #{_bert_att_forward.1} parent=1 // pred_fallthru
      _
    // Predicated region
    $region18: #{_bert_att_forward.1} parent=1 // pred_check
      _
    $region19: #{_bert_att_forward.1} parent=1 // pred_check_branch
      %723 = sbr.rel (0) target = $region21
    $region20: #{_bert_att_forward.1} parent=1 // pred_region
      %724 = dma.done [#allocation3], 32
    $region21: #{_bert_att_forward.1} parent=1 // pred_fallthru
      _
    %725 = vsyncpa [#allocation3], 1

</llo_original>
